<compile_context>
chip_gen: v6e
topology: v6e:2x2x1
jax: 0.10.0
libtpu: 0.0.40
codegen_flags: <defaults>
</compile_context>

<pallas_src>
import functools

import jax
import jax.numpy as jnp
from jax.experimental import pallas as pl
from jax.experimental.pallas import tpu as pltpu

_LANE = 128
_BF16_SUBLANE = 16          # bf16 min sublane tile
_MAX_B_TILE = 1024          # review: 512-1024 is safe everywhere; pick 1024
_NEG = -1e30                # bias for padded logit lanes -> exp() underflows to 0


def _round_up(x, m):
    return (x + m - 1) // m * m


# ---------------------------------------------------------------------------
# Fused Pallas kernel (built per static layer layout)
# ---------------------------------------------------------------------------
def _make_fused_mlp_kernel(layer_meta):
    """layer_meta: tuple of (row_offset_in_w_slab, din_pad, dout_pad) per layer.

    Kernel args: x_ref (bf16), w_slab_ref (bf16), b_slab_ref (f32), o_ref (f32).
    Everything stays in VMEM/vregs for the whole body.
    """
    n_layers = len(layer_meta)

    def kernel(x_ref, w_ref, b_ref, o_ref):
        h = x_ref[...]  # bf16 (b_tile, din0_pad)
        for l, (row_off, din_p, dout_p) in enumerate(layer_meta):
            w = w_ref[row_off:row_off + din_p, :dout_p]   # bf16 (din_p, dout_p)
            b = b_ref[8 * l:8 * l + 1, :dout_p]           # f32  (1, dout_p)
            z = jnp.dot(h, w, preferred_element_type=jnp.float32) + b
            if l < n_layers - 1:
                # bf16 activations: single cast per layer, halves live footprint.
                h = jnp.maximum(z, 0.0).astype(jnp.bfloat16)
            else:
                # log_softmax over the (padded) class dim; padded lanes have a
                # -1e30 bias so exp() contributes exactly 0 to the denominator.
                m = jnp.max(z, axis=-1, keepdims=True)
                shifted = z - m
                lse = jnp.log(jnp.sum(jnp.exp(shifted), axis=-1, keepdims=True))
                o_ref[...] = (shifted - lse).astype(o_ref.dtype)

    return kernel


# ---------------------------------------------------------------------------
# Parameter init (matches PyTorch nn.Linear default) + one-time prep
# ---------------------------------------------------------------------------
def init_fc_ewc_params(key, n_hidden, n_nodes, available_labels, image_size):
    """PyTorch-layout params: W is (Dout, Din), b is (Dout,), U[-1/sqrt(fan_in), +]."""
    dims = [image_size * image_size] + [n_nodes] * (n_hidden + 1)
    hidden = []
    for i in range(len(dims) - 1):
        din, dout = dims[i], dims[i + 1]
        key, kw, kb = jax.random.split(key, 3)
        bound = 1.0 / jnp.sqrt(din)
        w = jax.random.uniform(kw, (dout, din), jnp.float32, -bound, bound)
        b = jax.random.uniform(kb, (dout,), jnp.float32, -bound, bound)
        hidden.append((w, b))
    din, dout = n_nodes, available_labels
    key, kw, kb = jax.random.split(key, 3)
    bound = 1.0 / jnp.sqrt(din)
    w_out = jax.random.uniform(kw, (dout, din), jnp.float32, -bound, bound)
    b_out = jax.random.uniform(kb, (dout,), jnp.float32, -bound, bound)
    return hidden, (w_out, b_out)


def prepare_fc_ewc_params(hidden_params, out_params):
    """One-time prep: transpose to (Din, Dout), lane-pad, cast W to bf16, and
    pack all weights into one bf16 slab + all biases into one f32 slab.

    Returns (w_slab, b_slab, layer_meta, n_classes) where layer_meta is a
    static tuple of (row_offset, din_pad, dout_pad) per layer.
    """
    all_params = list(hidden_params) + [out_params]
    n_layers = len(all_params)

    dims = []
    for w, _ in all_params:
        dout, din = w.shape
        dims.append((din, dout, _round_up(din, _LANE), _round_up(dout, _LANE)))

    max_dout_p = max(d[3] for d in dims)
    total_rows = sum(d[2] for d in dims)

    w_slab = jnp.zeros((total_rows, max_dout_p), jnp.bfloat16)
    # Bias for layer l lives at sublane row 8*l (tile-aligned); padded rows unused.
    b_slab = jnp.zeros((8 * n_layers, max_dout_p), jnp.float32)

    layer_meta = []
    row_off = 0
    for l, ((w, b), (din, dout, din_p, dout_p)) in enumerate(zip(all_params, dims)):
        w_slab = w_slab.at[row_off:row_off + din, :dout].set(w.T.astype(jnp.bfloat16))
        b_slab = b_slab.at[8 * l, :dout].set(b.astype(jnp.float32))
        if l == n_layers - 1 and dout < dout_p:
            # Padded logit lanes: huge negative bias -> exp underflows to 0.
            b_slab = b_slab.at[8 * l, dout:dout_p].set(_NEG)
        layer_meta.append((row_off, din_p, dout_p))
        row_off += din_p

    n_classes = int(out_params[0].shape[0])
    return w_slab, b_slab, tuple(layer_meta), n_classes


# ---------------------------------------------------------------------------
# Forward
# ---------------------------------------------------------------------------
@functools.partial(jax.jit, static_argnames=("layer_meta", "n_classes"))
def fc_ewc_forward(x, w_slab, b_slab, layer_meta, n_classes):
    B = x.shape[0]
    xf = x.reshape(B, -1)                       # x.view(x.size(0), -1)
    din = xf.shape[1]
    din0_p = layer_meta[0][1]
    c_pad = layer_meta[-1][2]

    # Stream x as bf16 (MXU consumes bf16 anyway) -> halves dominant HBM bytes.
    x_in = xf.astype(jnp.bfloat16)

    # Batch tiling: multiple of 16 (bf16 sublane tile), cap at _MAX_B_TILE, and
    # split into >= 2 grid steps whenever the batch is big enough so v7x's two
    # TensorCores both get work (dimension_semantics=("parallel",)).
    B16 = _round_up(B, _BF16_SUBLANE)
    if B16 <= _BF16_SUBLANE:
        b_tile = _BF16_SUBLANE
    else:
        half = _round_up((B16 + 1) // 2, _BF16_SUBLANE)
        b_tile = min(_MAX_B_TILE, half)
    pad_b = _round_up(B, b_tile)
    grid = (pad_b // b_tile,)

    # Pad only when actually needed (ragged tail rows / non-128 feature dim);
    # no padded copy at all when B divides the tile and din is lane-aligned.
    pad_rows = pad_b - B
    pad_cols = din0_p - din
    if pad_rows or pad_cols:
        x_in = jnp.pad(x_in, ((0, pad_rows), (0, pad_cols)))

    kernel = _make_fused_mlp_kernel(layer_meta)

    in_specs = [
        pl.BlockSpec((b_tile, din0_p), lambda i: (i, 0)),        # x tile (bf16)
        pl.BlockSpec(w_slab.shape, lambda i: (0, 0)),            # packed weights
        pl.BlockSpec(b_slab.shape, lambda i: (0, 0)),            # packed biases
    ]
    out_specs = pl.BlockSpec((b_tile, c_pad), lambda i: (i, 0))

    # Advisory cost hint for XLA scheduling.
    flops = 2 * pad_b * sum(din_p * dout_p for _, din_p, dout_p in layer_meta)
    transcendentals = pad_b * (c_pad + 1)                        # exp + log
    bytes_accessed = (pad_b * din0_p * 2 + int(w_slab.size) * 2
                      + int(b_slab.size) * 4 + pad_b * c_pad * 4)

    out_padded = pl.pallas_call(
        kernel,
        out_shape=jax.ShapeDtypeStruct((pad_b, c_pad), jnp.float32),
        grid_spec=pltpu.PrefetchScalarGridSpec(
            num_scalar_prefetch=0,
            grid=grid,
            in_specs=in_specs,
            out_specs=out_specs,
        ),
        compiler_params=pltpu.CompilerParams(
            dimension_semantics=("parallel",)),
        cost_estimate=pl.CostEstimate(
            flops=flops,
            transcendentals=transcendentals,
            bytes_accessed=bytes_accessed),
    )(x_in, w_slab, b_slab)

    # Wrapper-side slice to the real (B, n_classes) payload; downstream code
    # that can consume the padded slab directly should skip this copy.
    return out_padded[:B, :n_classes]


# ---------------------------------------------------------------------------
# Pure-JAX reference (PyTorch semantics, f32)
# ---------------------------------------------------------------------------
def fc_ewc_reference(x, hidden_params, out_params):
    h = x.reshape(x.shape[0], -1).astype(jnp.float32)
    for w, b in hidden_params:
        h = jnp.maximum(h @ w.T + b, 0.0)
    w, b = out_params
    z = h @ w.T + b
    return jax.nn.log_softmax(z, axis=-1)


# ---------------------------------------------------------------------------
# Demo
# ---------------------------------------------------------------------------
if __name__ == "__main__":
    # Small shapes consistent with the module's forward:
    # batch=2, single-channel 16x16 images -> 256 input features,
    # n_hidden=2 extra hidden layers, n_nodes=32, 10 labels.
    n_hidden = 2
    n_nodes = 32
    available_labels = 10
    image_size = 16
    batch = 2

    key = jax.random.PRNGKey(0)
    key, kx = jax.random.split(key)
    x = jax.random.normal(kx, (batch, 1, image_size, image_size), jnp.float32)

    hidden_params, out_params = init_fc_ewc_params(
        key, n_hidden, n_nodes, available_labels, image_size)
    w_slab, b_slab, layer_meta, n_classes = prepare_fc_ewc_params(
        hidden_params, out_params)

    out = fc_ewc_forward(x, w_slab, b_slab, layer_meta, n_classes)
    out = jax.block_until_ready(out)

    # Sanity checks.
    assert out.shape == (batch, available_labels)
    row_sums = jnp.sum(jnp.exp(out), axis=-1)
    assert jnp.allclose(row_sums, jnp.ones_like(row_sums), atol=1e-4)

    # Compare against f32 reference (bf16 MXU inputs -> loose tolerance).
    # TODO(synk): if EWC Fisher accumulation needs tighter log-prob precision,
    # keep the tiny 128x128 hidden matmuls in f32 and only use bf16 for the
    # 256-K input layer.
    ref = fc_ewc_reference(x, hidden_params, out_params)
    assert jnp.allclose(out, ref, atol=5e-2), float(jnp.max(jnp.abs(out - ref)))

    print("KERNEL_OK")
</pallas_src>

<mosaic_0001>
module attributes {stable_mosaic.version = 11 : i64} {
  func.func @kernel(%arg0: i32, %arg1: memref<16x256xbf16, #tpu.memory_space<vmem>>, %arg2: memref<640x128xbf16, #tpu.memory_space<vmem>>, %arg3: memref<32x128xf32, #tpu.memory_space<vmem>>, %arg4: memref<16x128xf32, #tpu.memory_space<vmem>>) attributes {dimension_semantics = [#tpu.dimension_semantics<parallel>], iteration_bounds = array<i64: 1>, scalar_prefetch = 0 : i64, scratch_operands = 0 : i64, tpu.core_type = #tpu.core_type<tc>, window_params = [{transform_indices = @transform_0, window_bounds = array<i64: 16, 256>}, {pipeline_mode = #tpu.pipeline_mode<synchronous>, transform_indices = @transform_1, window_bounds = array<i64: 640, 128>}, {pipeline_mode = #tpu.pipeline_mode<synchronous>, transform_indices = @transform_2, window_bounds = array<i64: 32, 128>}, {transform_indices = @transform_3, window_bounds = array<i64: 16, 128>}]} {
    %c0 = arith.constant 0 : index
    %c0_0 = arith.constant 0 : index
    %0 = vector.load %arg1[%c0, %c0_0] : memref<16x256xbf16, #tpu.memory_space<vmem>>, vector<16x256xbf16>
    %c0_1 = arith.constant 0 : index
    %c0_2 = arith.constant 0 : index
    %1 = vector.load %arg2[%c0_1, %c0_2] : memref<640x128xbf16, #tpu.memory_space<vmem>>, vector<256x128xbf16>
    %c0_3 = arith.constant 0 : index
    %c0_4 = arith.constant 0 : index
    %2 = vector.load %arg3[%c0_3, %c0_4] : memref<32x128xf32, #tpu.memory_space<vmem>>, vector<1x128xf32>
    %cst = arith.constant dense<0.000000e+00> : vector<16x128xf32>
    %3 = tpu.matmul %0, %1, %cst {dimension_numbers = #tpu.dot_dimension_numbers<[1], [0], [0], [1], [0, 0, 1, 1], [], []>} : vector<16x256xbf16>, vector<256x128xbf16>, vector<16x128xf32> -> vector<16x128xf32>
    %4 = vector.broadcast %2 : vector<1x128xf32> to vector<16x128xf32>
    %5 = arith.addf %3, %4 : vector<16x128xf32>
    %cst_5 = arith.constant 0.000000e+00 : f32
    %6 = vector.broadcast %cst_5 : f32 to vector<16x128xf32>
    %7 = arith.maximumf %5, %6 : vector<16x128xf32>
    %8 = arith.truncf %7 : vector<16x128xf32> to vector<16x128xbf16>
    %c256 = arith.constant 256 : index
    %c0_6 = arith.constant 0 : index
    %9 = vector.load %arg2[%c256, %c0_6] : memref<640x128xbf16, #tpu.memory_space<vmem>>, vector<128x128xbf16>
    %c8 = arith.constant 8 : index
    %c0_7 = arith.constant 0 : index
    %10 = vector.load %arg3[%c8, %c0_7] : memref<32x128xf32, #tpu.memory_space<vmem>>, vector<1x128xf32>
    %cst_8 = arith.constant dense<0.000000e+00> : vector<16x128xf32>
    %11 = tpu.matmul %8, %9, %cst_8 {dimension_numbers = #tpu.dot_dimension_numbers<[1], [0], [0], [1], [0, 0, 1, 1], [], []>} : vector<16x128xbf16>, vector<128x128xbf16>, vector<16x128xf32> -> vector<16x128xf32>
    %12 = vector.broadcast %10 : vector<1x128xf32> to vector<16x128xf32>
    %13 = arith.addf %11, %12 : vector<16x128xf32>
    %cst_9 = arith.constant 0.000000e+00 : f32
    %14 = vector.broadcast %cst_9 : f32 to vector<16x128xf32>
    %15 = arith.maximumf %13, %14 : vector<16x128xf32>
    %16 = arith.truncf %15 : vector<16x128xf32> to vector<16x128xbf16>
    %c384 = arith.constant 384 : index
    %c0_10 = arith.constant 0 : index
    %17 = vector.load %arg2[%c384, %c0_10] : memref<640x128xbf16, #tpu.memory_space<vmem>>, vector<128x128xbf16>
    %c16 = arith.constant 16 : index
    %c0_11 = arith.constant 0 : index
    %18 = vector.load %arg3[%c16, %c0_11] : memref<32x128xf32, #tpu.memory_space<vmem>>, vector<1x128xf32>
    %cst_12 = arith.constant dense<0.000000e+00> : vector<16x128xf32>
    %19 = tpu.matmul %16, %17, %cst_12 {dimension_numbers = #tpu.dot_dimension_numbers<[1], [0], [0], [1], [0, 0, 1, 1], [], []>} : vector<16x128xbf16>, vector<128x128xbf16>, vector<16x128xf32> -> vector<16x128xf32>
    %20 = vector.broadcast %18 : vector<1x128xf32> to vector<16x128xf32>
    %21 = arith.addf %19, %20 : vector<16x128xf32>
    %cst_13 = arith.constant 0.000000e+00 : f32
    %22 = vector.broadcast %cst_13 : f32 to vector<16x128xf32>
    %23 = arith.maximumf %21, %22 : vector<16x128xf32>
    %24 = arith.truncf %23 : vector<16x128xf32> to vector<16x128xbf16>
    %c512 = arith.constant 512 : index
    %c0_14 = arith.constant 0 : index
    %25 = vector.load %arg2[%c512, %c0_14] : memref<640x128xbf16, #tpu.memory_space<vmem>>, vector<128x128xbf16>
    %c24 = arith.constant 24 : index
    %c0_15 = arith.constant 0 : index
    %26 = vector.load %arg3[%c24, %c0_15] : memref<32x128xf32, #tpu.memory_space<vmem>>, vector<1x128xf32>
    %cst_16 = arith.constant dense<0.000000e+00> : vector<16x128xf32>
    %27 = tpu.matmul %24, %25, %cst_16 {dimension_numbers = #tpu.dot_dimension_numbers<[1], [0], [0], [1], [0, 0, 1, 1], [], []>} : vector<16x128xbf16>, vector<128x128xbf16>, vector<16x128xf32> -> vector<16x128xf32>
    %28 = vector.broadcast %26 : vector<1x128xf32> to vector<16x128xf32>
    %29 = arith.addf %27, %28 : vector<16x128xf32>
    %cst_17 = arith.constant dense<0xFF800000> : vector<16xf32>
    %30 = vector.multi_reduction <maximumf>, %29, %cst_17 [1] : vector<16x128xf32> to vector<16xf32>
    %31 = vector.shape_cast %30 : vector<16xf32> to vector<16x1xf32>
    %32 = vector.broadcast %31 : vector<16x1xf32> to vector<16x128xf32>
    %33 = arith.subf %29, %32 : vector<16x128xf32>
    %34 = math.exp %33 : vector<16x128xf32>
    %cst_18 = arith.constant dense<0.000000e+00> : vector<16xf32>
    %35 = vector.multi_reduction <add>, %34, %cst_18 [1] : vector<16x128xf32> to vector<16xf32>
    %36 = vector.shape_cast %35 : vector<16xf32> to vector<16x1xf32>
    %37 = math.log %36 : vector<16x1xf32>
    %38 = vector.broadcast %37 : vector<16x1xf32> to vector<16x128xf32>
    %39 = arith.subf %33, %38 : vector<16x128xf32>
    %c0_19 = arith.constant 0 : index
    %c0_20 = arith.constant 0 : index
    %40 = vector.load %arg4[%c0_19, %c0_20] : memref<16x128xf32, #tpu.memory_space<vmem>>, vector<16x128xf32>
    tpu.vector_store %arg4[%c0_19, %c0_20], %39 {strides = array<i32>} : memref<16x128xf32, #tpu.memory_space<vmem>>, vector<16x128xf32>,
    return
  }
  func.func @transform_0(%arg0: i32) -> (i32, i32) {
    %c0_i32 = arith.constant 0 : i32
    %c0_i32_0 = arith.constant 0 : i32
    return %arg0, %c0_i32 : i32, i32
  }
  func.func @transform_1(%arg0: i32) -> (i32, i32) {
    %c0_i32 = arith.constant 0 : i32
    %c0_i32_0 = arith.constant 0 : i32
    %c0_i32_1 = arith.constant 0 : i32
    return %c0_i32, %c0_i32_0 : i32, i32
  }
  func.func @transform_2(%arg0: i32) -> (i32, i32) {
    %c0_i32 = arith.constant 0 : i32
    %c0_i32_0 = arith.constant 0 : i32
    %c0_i32_1 = arith.constant 0 : i32
    return %c0_i32, %c0_i32_0 : i32, i32
  }
  func.func @transform_3(%arg0: i32) -> (i32, i32) {
    %c0_i32 = arith.constant 0 : i32
    %c0_i32_0 = arith.constant 0 : i32
    return %arg0, %c0_i32 : i32, i32
  }
}

</mosaic_0001>

<llo_original>
// kernel: fc_ewc_forward.1
$region0: #{fc_ewc_forward.1}
  #allocation0 [shape = 'u32[]', space=smem, size = 0x4, offset = 0x4, fixed_abs, tag = 'smem constant byte address 0x4 - core index']
  #allocation1 [shape = 'u32[144,128]{1,0:T(1,128)}', space=vmem, size = 0x12000, scoped, tag = 'internal scratch']
  %s0 = inlined_call_operand.vmem [shape: bf16[16,256], index: 0, kind: input, shape index: {}]
  %s1 = inlined_call_operand.hbm [shape: bf16[640,128], index: 1, kind: input, shape index: {}]
  %s2 = inlined_call_operand.vmem [shape: f32[32,128], index: 2, kind: input, shape index: {}]
  %s3 = inlined_call_operand.vmem [shape: f32[16,128], index: 3, kind: output, shape index: {}]
  %s4 = sld [smem:[#allocation0]]
  $region26: #{fc_ewc_forward.1} parent=0
    _
  %s6 = ssub.s32 1, %s4
  %s7 = scalar_select 0, %s6, %s4
  $region1: #{fc_ewc_forward.1} parent=0
    #allocation2 [shape = 'u8[163840]{0}', space=vmem, size = 0x28000, scoped, tag = 'input window, operand 1, single buffered']
    #allocation3 [shape = 's32[1]{0}', space=sflag, size = 0x4, scoped, tag = 'scoped memory for fc_ewc_forward.1']
    %8 = vsyncpa [#allocation3], 0
    // Predicated region
    $region2: #{fc_ewc_forward.1} parent=1 // pred_check
      _
    $region3: #{fc_ewc_forward.1} parent=1 // pred_check_branch
      %10 = sbr.rel (0) target = $region5
    $region4: #{fc_ewc_forward.1} parent=1 // pred_region
      _
    $region5: #{fc_ewc_forward.1} parent=1 // pred_fallthru
      _
    // Predicated region
    $region6: #{fc_ewc_forward.1} parent=1 // pred_check
      _
    $region7: #{fc_ewc_forward.1} parent=1 // pred_check_branch
      %12 = sbr.rel (0) target = $region9
    $region8: #{fc_ewc_forward.1} parent=1 // pred_region
      %s14 = ssub.s32 5120, 5120
      %15 = vsyncadd [#allocation3], %s14
      %s16 = sshll.u32 [#allocation2], 4
      %s17 = int_to_ptr.vmem [resolvable:$true] %s16
      %22 = dma.hbm_to_vmem [thread:$0]  %s1, 5120, %s17, [#allocation3], 64, 64, 4
    $region9: #{fc_ewc_forward.1} parent=1 // pred_fallthru
      _
    // Predicated region
    $region10: #{fc_ewc_forward.1} parent=1 // pred_check
      _
    $region11: #{fc_ewc_forward.1} parent=1 // pred_check_branch
      %24 = sbr.rel (0) target = $region13
    $region12: #{fc_ewc_forward.1} parent=1 // pred_region
      _
    $region13: #{fc_ewc_forward.1} parent=1 // pred_fallthru
      _
    // Predicated region
    $region14: #{fc_ewc_forward.1} parent=1 // pred_check
      _
    $region15: #{fc_ewc_forward.1} parent=1 // pred_check_branch
      %26 = sbr.rel (0) target = $region17
    $region16: #{fc_ewc_forward.1} parent=1 // pred_region
      %27 = dma.done [#allocation3], 5120
    $region17: #{fc_ewc_forward.1} parent=1 // pred_fallthru
      _
    %v29 = vld [vmem:[%s0] sm:$0xff]
    %v30 = vld [vmem:[%s0 + $0x8] sm:$0xff]
    %v31 = vld [vmem:[#allocation2] sm:$0xf]
    %v32 = vld [vmem:[#allocation2 + $0x4] sm:$0xf]
    %v33 = vld [vmem:[#allocation2 + $0x8] sm:$0xf]
    %v34 = vld [vmem:[#allocation2 + $0xc] sm:$0xf]
    %v35 = vld [vmem:[#allocation2 + $0x10] sm:$0xf]
    %v36 = vld [vmem:[#allocation2 + $0x14] sm:$0xf]
    %v37 = vld [vmem:[#allocation2 + $0x18] sm:$0xf]
    %v38 = vld [vmem:[#allocation2 + $0x1c] sm:$0xf]
    %v39 = vld [vmem:[#allocation2 + $0x20] sm:$0xf]
    %v40 = vld [vmem:[#allocation2 + $0x24] sm:$0xf]
    %v41 = vld [vmem:[#allocation2 + $0x28] sm:$0xf]
    %v42 = vld [vmem:[#allocation2 + $0x2c] sm:$0xf]
    %v43 = vld [vmem:[#allocation2 + $0x30] sm:$0xf]
    %v44 = vld [vmem:[#allocation2 + $0x34] sm:$0xf]
    %v45 = vld [vmem:[#allocation2 + $0x38] sm:$0xf]
    %v46 = vld [vmem:[#allocation2 + $0x3c] sm:$0xf]
    %v47 = vld [vmem:[#allocation2 + $0x40] sm:$0xf]
    %v48 = vld [vmem:[#allocation2 + $0x44] sm:$0xf]
    %v49 = vld [vmem:[#allocation2 + $0x48] sm:$0xf]
    %v50 = vld [vmem:[#allocation2 + $0x4c] sm:$0xf]
    %v51 = vld [vmem:[#allocation2 + $0x50] sm:$0xf]
    %v52 = vld [vmem:[#allocation2 + $0x54] sm:$0xf]
    %v53 = vld [vmem:[#allocation2 + $0x58] sm:$0xf]
    %v54 = vld [vmem:[#allocation2 + $0x5c] sm:$0xf]
    %v55 = vld [vmem:[#allocation2 + $0x60] sm:$0xf]
    %v56 = vld [vmem:[#allocation2 + $0x64] sm:$0xf]
    %v57 = vld [vmem:[#allocation2 + $0x68] sm:$0xf]
    %v58 = vld [vmem:[#allocation2 + $0x6c] sm:$0xf]
    %v59 = vld [vmem:[#allocation2 + $0x70] sm:$0xf]
    %v60 = vld [vmem:[#allocation2 + $0x74] sm:$0xf]
    %v61 = vld [vmem:[#allocation2 + $0x78] sm:$0xf]
    %v62 = vld [vmem:[#allocation2 + $0x7c] sm:$0xf]
    %v63 = vld [vmem:[%s2] sm:$0x1]
    %v64 = vlaneseq
    %v65 = vshrl.u32 %v64, 7
    %v66 = vsub.s32 0, %v65
    %v67 = vrot.slane %v63, %v66
    %v70 = vunpack.c.l.b16 %v29
    %v71 = vunpack.c.h.b16 %v29
    %v72 = vunpack.c.l.b16 %v30
    %v73 = vunpack.c.h.b16 %v30
    %v74 = vpack.c.b16 %v72, %v70
    %v75 = vpack.c.b16 %v73, %v71
    %v110 = vunpack.c.l.b16 %v31
    %v111 = vunpack.c.l.b16 %v32
    %v112 = vunpack.c.l.b16 %v33
    %v113 = vunpack.c.l.b16 %v34
    %v114 = vunpack.c.l.b16 %v35
    %v115 = vunpack.c.l.b16 %v36
    %v116 = vunpack.c.l.b16 %v37
    %v117 = vunpack.c.l.b16 %v38
    %v118 = vunpack.c.l.b16 %v39
    %v119 = vunpack.c.l.b16 %v40
    %v120 = vunpack.c.l.b16 %v41
    %v121 = vunpack.c.l.b16 %v42
    %v122 = vunpack.c.l.b16 %v43
    %v123 = vunpack.c.l.b16 %v44
    %v124 = vunpack.c.l.b16 %v45
    %v125 = vunpack.c.l.b16 %v46
    %v126 = vunpack.c.l.b16 %v47
    %v127 = vunpack.c.l.b16 %v48
    %v128 = vunpack.c.l.b16 %v49
    %v129 = vunpack.c.l.b16 %v50
    %v130 = vunpack.c.l.b16 %v51
    %v131 = vunpack.c.l.b16 %v52
    %v132 = vunpack.c.l.b16 %v53
    %v133 = vunpack.c.l.b16 %v54
    %v134 = vunpack.c.l.b16 %v55
    %v135 = vunpack.c.l.b16 %v56
    %v136 = vunpack.c.l.b16 %v57
    %v137 = vunpack.c.l.b16 %v58
    %v138 = vunpack.c.l.b16 %v59
    %v139 = vunpack.c.l.b16 %v60
    %v140 = vunpack.c.l.b16 %v61
    %v141 = vunpack.c.l.b16 %v62
    %v142 = vpack.c.b16 %v111, %v110
    %v143 = vpack.c.b16 %v113, %v112
    %v144 = vpack.c.b16 %v115, %v114
    %v145 = vpack.c.b16 %v117, %v116
    %v146 = vpack.c.b16 %v119, %v118
    %v147 = vpack.c.b16 %v121, %v120
    %v148 = vpack.c.b16 %v123, %v122
    %v149 = vpack.c.b16 %v125, %v124
    %v150 = vpack.c.b16 %v127, %v126
    %v151 = vpack.c.b16 %v129, %v128
    %v152 = vpack.c.b16 %v131, %v130
    %v153 = vpack.c.b16 %v133, %v132
    %v154 = vpack.c.b16 %v135, %v134
    %v155 = vpack.c.b16 %v137, %v136
    %v156 = vpack.c.b16 %v139, %v138
    %v157 = vpack.c.b16 %v141, %v140
    %174 = vmatprep.subr.bf16.mxu0 0
    %175 = vmatpush1.bf16.msra.mxu0 %v149
    %176 = vmatprep.subr.bf16.mxu0 0
    %177 = vmatpush1.bf16.msra.mxu0 %v148
    %178 = vmatprep.subr.bf16.mxu0 0
    %179 = vmatpush1.bf16.msra.mxu0 %v147
    %180 = vmatprep.subr.bf16.mxu0 0
    %181 = vmatpush1.bf16.msra.mxu0 %v146
    %182 = vmatprep.subr.bf16.mxu0 0
    %183 = vmatpush1.bf16.msra.mxu0 %v145
    %184 = vmatprep.subr.bf16.mxu0 0
    %185 = vmatpush1.bf16.msra.mxu0 %v144
    %186 = vmatprep.subr.bf16.mxu0 0
    %187 = vmatpush1.bf16.msra.mxu0 %v143
    %188 = vmatprep.subr.bf16.mxu0 0
    %189 = vmatpush1.bf16.msra.mxu0 %v142
    %190 = vmatprep.subr.bf16.mxu0 0
    %191 = vmatpush2.bf16.msra.mxu0 %v157
    %192 = vmatprep.subr.bf16.mxu0 0
    %193 = vmatpush2.bf16.msra.mxu0 %v156
    %194 = vmatprep.subr.bf16.mxu0 0
    %195 = vmatpush2.bf16.msra.mxu0 %v155
    %196 = vmatprep.subr.bf16.mxu0 0
    %197 = vmatpush2.bf16.msra.mxu0 %v154
    %198 = vmatprep.subr.bf16.mxu0 0
    %199 = vmatpush2.bf16.msra.mxu0 %v153
    %200 = vmatprep.subr.bf16.mxu0 0
    %201 = vmatpush2.bf16.msra.mxu0 %v152
    %202 = vmatprep.subr.bf16.mxu0 0
    %203 = vmatpush2.bf16.msra.mxu0 %v151
    %204 = vmatprep.subr.bf16.mxu0 0
    %205 = vmatpush2.bf16.msra.mxu0 %v150
    %206 = vmatprep.mubr.bf16.mxu0 %v75
    %207 = vmatmul.mubr.bf16.gmra.mxu0 %v74
    %v208 = vpop.f32.mrf.mxu0
    %v209 = vadd.f32 %v67, %v208
    %v210 = vpop.f32.mrf.mxu0
    %v211 = vpop.f32.mrf.mxu0
    %v212 = vadd.f32 %v67, %v211
    %v213 = vpop.f32.mrf.mxu0
    %214 = vdwg.mxu0
    %v215 = vmax.f32 %v209, 0.0
    %v216 = vmax.f32 %v212, 0.0
    %v217 = vpack.c.bf16 %v216, %v215
    %v218 = vld [vmem:[#allocation2 + $0x80] sm:$0xf]
    %v219 = vld [vmem:[#allocation2 + $0x84] sm:$0xf]
    %v220 = vld [vmem:[#allocation2 + $0x88] sm:$0xf]
    %v221 = vld [vmem:[#allocation2 + $0x8c] sm:$0xf]
    %v222 = vld [vmem:[#allocation2 + $0x90] sm:$0xf]
    %v223 = vld [vmem:[#allocation2 + $0x94] sm:$0xf]
    %v224 = vld [vmem:[#allocation2 + $0x98] sm:$0xf]
    %v225 = vld [vmem:[#allocation2 + $0x9c] sm:$0xf]
    %v226 = vld [vmem:[#allocation2 + $0xa0] sm:$0xf]
    %v227 = vld [vmem:[#allocation2 + $0xa4] sm:$0xf]
    %v228 = vld [vmem:[#allocation2 + $0xa8] sm:$0xf]
    %v229 = vld [vmem:[#allocation2 + $0xac] sm:$0xf]
    %v230 = vld [vmem:[#allocation2 + $0xb0] sm:$0xf]
    %v231 = vld [vmem:[#allocation2 + $0xb4] sm:$0xf]
    %v232 = vld [vmem:[#allocation2 + $0xb8] sm:$0xf]
    %v233 = vld [vmem:[#allocation2 + $0xbc] sm:$0xf]
    %v234 = vld [vmem:[%s2 + $0x8] sm:$0x1]
    %v235 = vlaneseq
    %v236 = vshrl.u32 %v235, 7
    %v237 = vsub.s32 0, %v236
    %v238 = vrot.slane %v234, %v237
    %v255 = vunpack.c.l.b16 %v218
    %v256 = vunpack.c.l.b16 %v219
    %v257 = vunpack.c.l.b16 %v220
    %v258 = vunpack.c.l.b16 %v221
    %v259 = vunpack.c.l.b16 %v222
    %v260 = vunpack.c.l.b16 %v223
    %v261 = vunpack.c.l.b16 %v224
    %v262 = vunpack.c.l.b16 %v225
    %v263 = vunpack.c.l.b16 %v226
    %v264 = vunpack.c.l.b16 %v227
    %v265 = vunpack.c.l.b16 %v228
    %v266 = vunpack.c.l.b16 %v229
    %v267 = vunpack.c.l.b16 %v230
    %v268 = vunpack.c.l.b16 %v231
    %v269 = vunpack.c.l.b16 %v232
    %v270 = vunpack.c.l.b16 %v233
    %v271 = vpack.c.b16 %v256, %v255
    %v272 = vpack.c.b16 %v258, %v257
    %v273 = vpack.c.b16 %v260, %v259
    %v274 = vpack.c.b16 %v262, %v261
    %v275 = vpack.c.b16 %v264, %v263
    %v276 = vpack.c.b16 %v266, %v265
    %v277 = vpack.c.b16 %v268, %v267
    %v278 = vpack.c.b16 %v270, %v269
    %287 = vmatprep.subr.bf16.mxu0 0
    %288 = vmatpush1.bf16.msra.mxu0 %v278
    %289 = vmatprep.subr.bf16.mxu0 0
    %290 = vmatpush1.bf16.msra.mxu0 %v277
    %291 = vmatprep.subr.bf16.mxu0 0
    %292 = vmatpush1.bf16.msra.mxu0 %v276
    %293 = vmatprep.subr.bf16.mxu0 0
    %294 = vmatpush1.bf16.msra.mxu0 %v275
    %295 = vmatprep.subr.bf16.mxu0 0
    %296 = vmatpush1.bf16.msra.mxu0 %v274
    %297 = vmatprep.subr.bf16.mxu0 0
    %298 = vmatpush1.bf16.msra.mxu0 %v273
    %299 = vmatprep.subr.bf16.mxu0 0
    %300 = vmatpush1.bf16.msra.mxu0 %v272
    %301 = vmatprep.subr.bf16.mxu0 0
    %302 = vmatpush1.bf16.msra.mxu0 %v271
    %303 = vmatprep.subr.bf16.mxu0 0
    %304 = vmatpush2.bf16.msra.mxu0 0
    %305 = vmatprep.subr.bf16.mxu0 0
    %306 = vmatpush2.bf16.msra.mxu0 0
    %307 = vmatprep.subr.bf16.mxu0 0
    %308 = vmatpush2.bf16.msra.mxu0 0
    %309 = vmatprep.subr.bf16.mxu0 0
    %310 = vmatpush2.bf16.msra.mxu0 0
    %311 = vmatprep.subr.bf16.mxu0 0
    %312 = vmatpush2.bf16.msra.mxu0 0
    %313 = vmatprep.subr.bf16.mxu0 0
    %314 = vmatpush2.bf16.msra.mxu0 0
    %315 = vmatprep.subr.bf16.mxu0 0
    %316 = vmatpush2.bf16.msra.mxu0 0
    %317 = vmatprep.subr.bf16.mxu0 0
    %318 = vmatpush2.bf16.msra.mxu0 0
    %319 = vmatprep.mubr.bf16.mxu0 0
    %320 = vmatmul.mubr.bf16.gmra.mxu0 %v217
    %v321 = vpop.f32.mrf.mxu0
    %v322 = vadd.f32 %v238, %v321
    %v323 = vpop.f32.mrf.mxu0
    %v324 = vpop.f32.mrf.mxu0
    %v325 = vadd.f32 %v238, %v324
    %v326 = vpop.f32.mrf.mxu0
    %327 = vdwg.mxu0
    %v328 = vmax.f32 %v322, 0.0
    %v329 = vmax.f32 %v325, 0.0
    %v330 = vpack.c.bf16 %v329, %v328
    %v331 = vld [vmem:[#allocation2 + $0xc0] sm:$0xf]
    %v332 = vld [vmem:[#allocation2 + $0xc4] sm:$0xf]
    %v333 = vld [vmem:[#allocation2 + $0xc8] sm:$0xf]
    %v334 = vld [vmem:[#allocation2 + $0xcc] sm:$0xf]
    %v335 = vld [vmem:[#allocation2 + $0xd0] sm:$0xf]
    %v336 = vld [vmem:[#allocation2 + $0xd4] sm:$0xf]
    %v337 = vld [vmem:[#allocation2 + $0xd8] sm:$0xf]
    %v338 = vld [vmem:[#allocation2 + $0xdc] sm:$0xf]
    %v339 = vld [vmem:[#allocation2 + $0xe0] sm:$0xf]
    %v340 = vld [vmem:[#allocation2 + $0xe4] sm:$0xf]
    %v341 = vld [vmem:[#allocation2 + $0xe8] sm:$0xf]
    %v342 = vld [vmem:[#allocation2 + $0xec] sm:$0xf]
    %v343 = vld [vmem:[#allocation2 + $0xf0] sm:$0xf]
    %v344 = vld [vmem:[#allocation2 + $0xf4] sm:$0xf]
    %v345 = vld [vmem:[#allocation2 + $0xf8] sm:$0xf]
    %v346 = vld [vmem:[#allocation2 + $0xfc] sm:$0xf]
    %v347 = vld [vmem:[%s2 + $0x10] sm:$0x1]
    %v348 = vlaneseq
    %v349 = vshrl.u32 %v348, 7
    %v350 = vsub.s32 0, %v349
    %v351 = vrot.slane %v347, %v350
    %v368 = vunpack.c.l.b16 %v331
    %v369 = vunpack.c.l.b16 %v332
    %v370 = vunpack.c.l.b16 %v333
    %v371 = vunpack.c.l.b16 %v334
    %v372 = vunpack.c.l.b16 %v335
    %v373 = vunpack.c.l.b16 %v336
    %v374 = vunpack.c.l.b16 %v337
    %v375 = vunpack.c.l.b16 %v338
    %v376 = vunpack.c.l.b16 %v339
    %v377 = vunpack.c.l.b16 %v340
    %v378 = vunpack.c.l.b16 %v341
    %v379 = vunpack.c.l.b16 %v342
    %v380 = vunpack.c.l.b16 %v343
    %v381 = vunpack.c.l.b16 %v344
    %v382 = vunpack.c.l.b16 %v345
    %v383 = vunpack.c.l.b16 %v346
    %v384 = vpack.c.b16 %v369, %v368
    %v385 = vpack.c.b16 %v371, %v370
    %v386 = vpack.c.b16 %v373, %v372
    %v387 = vpack.c.b16 %v375, %v374
    %v388 = vpack.c.b16 %v377, %v376
    %v389 = vpack.c.b16 %v379, %v378
    %v390 = vpack.c.b16 %v381, %v380
    %v391 = vpack.c.b16 %v383, %v382
    %400 = vmatprep.subr.bf16.mxu0 0
    %401 = vmatpush1.bf16.msra.mxu0 %v391
    %402 = vmatprep.subr.bf16.mxu0 0
    %403 = vmatpush1.bf16.msra.mxu0 %v390
    %404 = vmatprep.subr.bf16.mxu0 0
    %405 = vmatpush1.bf16.msra.mxu0 %v389
    %406 = vmatprep.subr.bf16.mxu0 0
    %407 = vmatpush1.bf16.msra.mxu0 %v388
    %408 = vmatprep.subr.bf16.mxu0 0
    %409 = vmatpush1.bf16.msra.mxu0 %v387
    %410 = vmatprep.subr.bf16.mxu0 0
    %411 = vmatpush1.bf16.msra.mxu0 %v386
    %412 = vmatprep.subr.bf16.mxu0 0
    %413 = vmatpush1.bf16.msra.mxu0 %v385
    %414 = vmatprep.subr.bf16.mxu0 0
    %415 = vmatpush1.bf16.msra.mxu0 %v384
    %416 = vmatprep.subr.bf16.mxu0 0
    %417 = vmatpush2.bf16.msra.mxu0 0
    %418 = vmatprep.subr.bf16.mxu0 0
    %419 = vmatpush2.bf16.msra.mxu0 0
    %420 = vmatprep.subr.bf16.mxu0 0
    %421 = vmatpush2.bf16.msra.mxu0 0
    %422 = vmatprep.subr.bf16.mxu0 0
    %423 = vmatpush2.bf16.msra.mxu0 0
    %424 = vmatprep.subr.bf16.mxu0 0
    %425 = vmatpush2.bf16.msra.mxu0 0
    %426 = vmatprep.subr.bf16.mxu0 0
    %427 = vmatpush2.bf16.msra.mxu0 0
    %428 = vmatprep.subr.bf16.mxu0 0
    %429 = vmatpush2.bf16.msra.mxu0 0
    %430 = vmatprep.subr.bf16.mxu0 0
    %431 = vmatpush2.bf16.msra.mxu0 0
    %432 = vmatprep.mubr.bf16.mxu0 0
    %433 = vmatmul.mubr.bf16.gmra.mxu0 %v330
    %v434 = vpop.f32.mrf.mxu0
    %v435 = vadd.f32 %v351, %v434
    %v436 = vpop.f32.mrf.mxu0
    %v437 = vpop.f32.mrf.mxu0
    %v438 = vadd.f32 %v351, %v437
    %v439 = vpop.f32.mrf.mxu0
    %440 = vdwg.mxu0
    %v441 = vmax.f32 %v435, 0.0
    %v442 = vmax.f32 %v438, 0.0
    %v443 = vpack.c.bf16 %v442, %v441
    %v444 = vld [vmem:[#allocation2 + $0x100] sm:$0xf]
    %v445 = vld [vmem:[#allocation2 + $0x104] sm:$0xf]
    %v446 = vld [vmem:[#allocation2 + $0x108] sm:$0xf]
    %v447 = vld [vmem:[#allocation2 + $0x10c] sm:$0xf]
    %v448 = vld [vmem:[#allocation2 + $0x110] sm:$0xf]
    %v449 = vld [vmem:[#allocation2 + $0x114] sm:$0xf]
    %v450 = vld [vmem:[#allocation2 + $0x118] sm:$0xf]
    %v451 = vld [vmem:[#allocation2 + $0x11c] sm:$0xf]
    %v452 = vld [vmem:[#allocation2 + $0x120] sm:$0xf]
    %v453 = vld [vmem:[#allocation2 + $0x124] sm:$0xf]
    %v454 = vld [vmem:[#allocation2 + $0x128] sm:$0xf]
    %v455 = vld [vmem:[#allocation2 + $0x12c] sm:$0xf]
    %v456 = vld [vmem:[#allocation2 + $0x130] sm:$0xf]
    %v457 = vld [vmem:[#allocation2 + $0x134] sm:$0xf]
    %v458 = vld [vmem:[#allocation2 + $0x138] sm:$0xf]
    %v459 = vld [vmem:[#allocation2 + $0x13c] sm:$0xf]
    %v460 = vld [vmem:[%s2 + $0x18] sm:$0x1]
    %v461 = vlaneseq
    %v462 = vshrl.u32 %v461, 7
    %v463 = vsub.s32 0, %v462
    %v464 = vrot.slane %v460, %v463
    %v481 = vunpack.c.l.b16 %v444
    %v482 = vunpack.c.l.b16 %v445
    %v483 = vunpack.c.l.b16 %v446
    %v484 = vunpack.c.l.b16 %v447
    %v485 = vunpack.c.l.b16 %v448
    %v486 = vunpack.c.l.b16 %v449
    %v487 = vunpack.c.l.b16 %v450
    %v488 = vunpack.c.l.b16 %v451
    %v489 = vunpack.c.l.b16 %v452
    %v490 = vunpack.c.l.b16 %v453
    %v491 = vunpack.c.l.b16 %v454
    %v492 = vunpack.c.l.b16 %v455
    %v493 = vunpack.c.l.b16 %v456
    %v494 = vunpack.c.l.b16 %v457
    %v495 = vunpack.c.l.b16 %v458
    %v496 = vunpack.c.l.b16 %v459
    %v497 = vpack.c.b16 %v482, %v481
    %v498 = vpack.c.b16 %v484, %v483
    %v499 = vpack.c.b16 %v486, %v485
    %v500 = vpack.c.b16 %v488, %v487
    %v501 = vpack.c.b16 %v490, %v489
    %v502 = vpack.c.b16 %v492, %v491
    %v503 = vpack.c.b16 %v494, %v493
    %v504 = vpack.c.b16 %v496, %v495
    %513 = vmatprep.subr.bf16.mxu0 0
    %514 = vmatpush1.bf16.msra.mxu0 %v504
    %515 = vmatprep.subr.bf16.mxu0 0
    %516 = vmatpush1.bf16.msra.mxu0 %v503
    %517 = vmatprep.subr.bf16.mxu0 0
    %518 = vmatpush1.bf16.msra.mxu0 %v502
    %519 = vmatprep.subr.bf16.mxu0 0
    %520 = vmatpush1.bf16.msra.mxu0 %v501
    %521 = vmatprep.subr.bf16.mxu0 0
    %522 = vmatpush1.bf16.msra.mxu0 %v500
    %523 = vmatprep.subr.bf16.mxu0 0
    %524 = vmatpush1.bf16.msra.mxu0 %v499
    %525 = vmatprep.subr.bf16.mxu0 0
    %526 = vmatpush1.bf16.msra.mxu0 %v498
    %527 = vmatprep.subr.bf16.mxu0 0
    %528 = vmatpush1.bf16.msra.mxu0 %v497
    %529 = vmatprep.subr.bf16.mxu0 0
    %530 = vmatpush2.bf16.msra.mxu0 0
    %531 = vmatprep.subr.bf16.mxu0 0
    %532 = vmatpush2.bf16.msra.mxu0 0
    %533 = vmatprep.subr.bf16.mxu0 0
    %534 = vmatpush2.bf16.msra.mxu0 0
    %535 = vmatprep.subr.bf16.mxu0 0
    %536 = vmatpush2.bf16.msra.mxu0 0
    %537 = vmatprep.subr.bf16.mxu0 0
    %538 = vmatpush2.bf16.msra.mxu0 0
    %539 = vmatprep.subr.bf16.mxu0 0
    %540 = vmatpush2.bf16.msra.mxu0 0
    %541 = vmatprep.subr.bf16.mxu0 0
    %542 = vmatpush2.bf16.msra.mxu0 0
    %543 = vmatprep.subr.bf16.mxu0 0
    %544 = vmatpush2.bf16.msra.mxu0 0
    %545 = vmatprep.mubr.bf16.mxu0 0
    %546 = vmatmul.mubr.bf16.gmra.mxu0 %v443
    %v547 = vpop.f32.mrf.mxu0
    %v548 = vadd.f32 %v464, %v547
    %v549 = vpop.f32.mrf.mxu0
    %v550 = vpop.f32.mrf.mxu0
    %v551 = vadd.f32 %v464, %v550
    %v552 = vpop.f32.mrf.mxu0
    %553 = vdwg.mxu0
    %554 = vmax.xlane.f32.xlu0 %v548
    %v555 = vpop.xlane.xlu0 %554
    %556 = vmax.xlane.f32.xlu0 %v551
    %v557 = vpop.xlane.xlu0 %556
    %v558 = vsub.f32 %v548, %v555
    %v559 = vsub.f32 %v551, %v557
    %v560 = vmul.f32 %v558, 1.442695
    %v561 = vpow.pop %v560
    %v562 = vmul.f32 %v559, 1.442695
    %v563 = vpow.pop %v562
    %564 = vadd.xlane.f32.xlu0 %v561
    %v565 = vpop.xlane.xlu0 %564
    %566 = vadd.xlane.f32.xlu0 %v563
    %v567 = vpop.xlane.xlu0 %566
    %v568 = vlog2.pop %v565
    %v569 = vmul.f32 %v568, 0.6931472
    %v570 = vlog2.pop %v567
    %v571 = vmul.f32 %v570, 0.6931472
    %v572 = vsub.f32 %v558, %v569
    %v573 = vsub.f32 %v559, %v571
    %574 = vst [vmem:[%s3] sm:$0xff] %v572
    %575 = vst [vmem:[%s3 + $0x8] sm:$0xff] %v573
    // Predicated region
    $region18: #{fc_ewc_forward.1} parent=1 // pred_check
      _
    $region19: #{fc_ewc_forward.1} parent=1 // pred_check_branch
      %577 = sbr.rel (0) target = $region21
    $region20: #{fc_ewc_forward.1} parent=1 // pred_region
      _
    $region21: #{fc_ewc_forward.1} parent=1 // pred_fallthru
      _
    // Predicated region
    $region22: #{fc_ewc_forward.1} parent=1 // pred_check
      _
    $region23: #{fc_ewc_forward.1} parent=1 // pred_check_branch
      %579 = sbr.rel (0) target = $region25
    $region24: #{fc_ewc_forward.1} parent=1 // pred_region
      _
    $region25: #{fc_ewc_forward.1} parent=1 // pred_fallthru
      _
    %580 = vsyncpa [#allocation3], 1

</llo_original>
